<compile_context>
chip_gen: v6e
topology: v6e:2x2x1
jax: 0.10.0
libtpu: 0.0.40
codegen_flags: <defaults>
</compile_context>

<pallas_src>
import functools

import jax
import jax.numpy as jnp
from jax.experimental import pallas as pl
from jax.experimental.pallas import tpu as pltpu


_SUBLANE = 8
_LANE = 128
_MAX_TD_BYTES = 32 * 1024          # per-row feature-tile cap (<= 64 lane chunks)


def _sublane_pack(itemsize):
    """Rows per packed vreg: 8 for 32-bit, 16 for 16-bit, 32 for 8-bit dtypes."""
    return max(_SUBLANE, (32 // max(int(itemsize) * 8, 1)) * _SUBLANE)


def _vmem_capacity_bytes():
    """Physical VMEM of this TPU generation (fallback: v7x's 64 MiB per core)."""
    try:
        cap = getattr(pltpu.get_tpu_info(), "vmem_capacity_bytes", None)
        if cap:
            return int(cap)
    except Exception:
        pass
    return 64 << 20


def _choose_tiles(b, d, itemsize, tile_budget, block_b=None, block_d=None):
    """Pick (TB, TD). TD is full-D (up to a byte cap) or a multiple of 128;
    TB is full-B or a multiple of the dtype's sublane packing, sized so one
    input tile is ~tile_budget bytes, and capped so that nb >= 2 whenever B
    allows it (megacore sharding on v7x)."""
    pack = _sublane_pack(itemsize)
    max_td = max(_LANE, _MAX_TD_BYTES // max(itemsize, 1))

    # ---- feature tile ----
    if block_d is not None:
        td = int(block_d)
        if td != d and (td % _LANE) != 0:
            raise ValueError("block_d must equal D or be a multiple of 128")
    elif d <= max_td:
        td = d
    else:
        td = min(max_td,
                 max(_LANE, (tile_budget // (pack * itemsize)) // _LANE * _LANE))

    # ---- batch tile ----
    if block_b is not None:
        tb = int(block_b)
        if tb != b and (tb % _SUBLANE) != 0:
            raise ValueError("block_b must equal B or be a multiple of 8")
    elif b <= pack:
        tb = b
    else:
        rows = max(pack, tile_budget // max(td * itemsize, 1))
        tb = max(pack, (rows // pack) * pack)
        # keep >= 2 batch tiles so the 'parallel' axis can use both
        # TensorCores on v7x; costs only one extra ~0.35us step on 1-TC chips
        half = -(-b // 2)                      # ceil(b / 2)
        half = -(-half // pack) * pack         # round up to sublane packing
        tb = min(tb, half)
    return tb, td


def _acc_chunks(acc_ref, vals, td):
    """Accumulate 128-wide column chunks of `vals` (tb, td) into a lane-wide
    (tb, 128) f32 accumulator with plain VALU adds; the single 128->1
    cross-lane reduction happens only at finalize."""
    acc = acc_ref[...]
    if td % _LANE == 0:
        for c in range(td // _LANE):
            acc = acc + vals[:, c * _LANE:(c + 1) * _LANE]
    else:
        # single ragged full-D feature step: one lane reduce, land it in lane 0
        partial = jnp.sum(vals, axis=-1, keepdims=True)          # (tb, 1)
        lane = jax.lax.broadcasted_iota(jnp.int32, acc.shape, 1)
        acc = acc + jnp.where(lane == 0, partial, 0.0)
    acc_ref[...] = acc


def _contrastive_loss_kernel(x1_ref, x2_ref, t_ref, out_ref, *acc_refs,
                             margin, dist_metric, b, d, tb, td, last_cols):
    i = pl.program_id(0)          # batch tile   (parallel)
    j = pl.program_id(1)          # feature tile (reduction, arbitrary, last)
    nd = pl.num_programs(1)

    @pl.when(j == 0)
    def _init():
        for a in acc_refs:
            a[...] = jnp.zeros(a.shape, a.dtype)

    def accumulate(mask_cols):
        x1 = x1_ref[...].astype(jnp.float32)          # (tb, td)
        x2 = x2_ref[...].astype(jnp.float32)
        if dist_metric == "euclidean":
            # torch.pairwise_distance: ||x1 - x2 + eps||_2, eps = 1e-6
            diff = x1 - x2 + 1e-6
            if mask_cols:
                col = jax.lax.broadcasted_iota(jnp.int32, (1, td), 1)
                diff = jnp.where(col < last_cols, diff, 0.0)
            _acc_chunks(acc_refs[0], diff * diff, td)
        else:  # cosine
            if mask_cols:
                col = jax.lax.broadcasted_iota(jnp.int32, (1, td), 1)
                ok = col < last_cols
                x1 = jnp.where(ok, x1, 0.0)
                x2 = jnp.where(ok, x2, 0.0)
            _acc_chunks(acc_refs[0], x1 * x2, td)
            _acc_chunks(acc_refs[1], x1 * x1, td)
            _acc_chunks(acc_refs[2], x2 * x2, td)

    if (d % td) != 0:
        # only the last feature tile is ragged: unmasked fast path elsewhere
        @pl.when(j < nd - 1)
        def _interior():
            accumulate(False)

        @pl.when(j == nd - 1)
        def _edge():
            accumulate(True)
    else:
        accumulate(False)

    @pl.when(j == nd - 1)
    def _finalize():
        t = t_ref[...].astype(jnp.float32)             # (tb, 1)
        if dist_metric == "euclidean":
            d2 = jnp.sum(acc_refs[0][...], axis=-1, keepdims=True)
            dist = jnp.sqrt(d2)
            pos = 0.5 * (1.0 - t) * d2                 # reuse d^2 for the pos term
        else:
            dot = jnp.sum(acc_refs[0][...], axis=-1, keepdims=True)
            n1 = jnp.sqrt(jnp.sum(acc_refs[1][...], axis=-1, keepdims=True))
            n2 = jnp.sqrt(jnp.sum(acc_refs[2][...], axis=-1, keepdims=True))
            # torch.cosine_similarity: each norm clamped separately, eps=1e-8
            dist = dot / (jnp.maximum(n1, 1e-8) * jnp.maximum(n2, 1e-8))
            pos = 0.5 * (1.0 - t) * dist * dist
        hinge = jnp.maximum(margin - dist, 0.0)
        loss = pos + 0.5 * t * hinge * hinge           # (tb, 1)
        if (b % tb) != 0:
            # mask padded rows of the last batch tile BEFORE the cross-row sum
            row = jax.lax.broadcasted_iota(jnp.int32, (tb, 1), 0) + i * tb
            loss = jnp.where(row < b, loss, 0.0)
        out_ref[...] = jnp.sum(loss).reshape(1, 1, 1)


def contrastive_loss(x1, x2, target, *, margin=1.0, dist_metric="euclidean",
                     block_b=None, block_d=None):
    """Pallas TPU implementation of ContrastiveLoss.forward.

    x1, x2 : (B, D) embeddings (the pair output[0], output[1]); kept in their
             storage dtype through the DMA, cast to f32 in-kernel.
    target : (B,) 0/1 labels.
    Returns a scalar f32 loss (mean over the batch).
    """
    if dist_metric not in ("euclidean", "cosine"):
        raise ValueError(f"unknown dist_metric {dist_metric!r}")
    assert x1.shape == x2.shape and x1.ndim == 2
    b, d = x1.shape
    itemsize = jnp.dtype(x1.dtype).itemsize

    # Generation-aware budgets: per-input tile ~8 MiB for 32-bit dtypes
    # (scaled for narrow dtypes), total footprint <= ~70% of physical VMEM.
    cap = _vmem_capacity_bytes()
    budget_total = cap * 7 // 10
    per_tile_base = (8 << 20) if itemsize >= 4 else (8 << 20) * (4 // itemsize)
    tile_budget = max(1 << 20, min(per_tile_base, budget_total // 5))

    tb, td = _choose_tiles(b, d, itemsize, tile_budget, block_b, block_d)
    nb = pl.cdiv(b, tb)
    nd = pl.cdiv(d, td)
    last_cols = d - (nd - 1) * td     # valid columns in the last feature tile

    t2d = target.reshape(b, 1).astype(jnp.float32)

    n_acc = 1 if dist_metric == "euclidean" else 3
    kernel = functools.partial(
        _contrastive_loss_kernel,
        margin=float(margin), dist_metric=dist_metric,
        b=b, d=d, tb=tb, td=td, last_cols=last_cols)

    # VMEM estimate: 2 inputs x 2 pipeline buffers x tile + lane-padded target
    # block (double-buffered) + lane-wide f32 accumulators + output block.
    tile_bytes = tb * td * itemsize
    est = (2 * 2 * tile_bytes
           + 2 * tb * _LANE * 4
           + n_acc * tb * _LANE * 4
           + 2 * _SUBLANE * _LANE * 4)
    vmem_ceiling = cap * 17 // 20
    if est > vmem_ceiling:
        raise ValueError(
            f"requested tiles need ~{est >> 20} MiB VMEM, above the "
            f"~{vmem_ceiling >> 20} MiB budget on this TPU; pass smaller "
            "block_b / block_d")
    vmem_limit = int(min(max(est + (4 << 20), 16 << 20), vmem_ceiling))

    flops = (6 if dist_metric == "cosine" else 4) * b * d
    cost = pl.CostEstimate(
        flops=flops,
        transcendentals=(2 * b if dist_metric == "cosine" else b),
        bytes_accessed=2 * b * d * itemsize + b * 4 + nb * 4,
    )

    partials = pl.pallas_call(
        kernel,
        out_shape=jax.ShapeDtypeStruct((nb, 1, 1), jnp.float32),
        grid_spec=pltpu.PrefetchScalarGridSpec(
            num_scalar_prefetch=0,
            grid=(nb, nd),
            in_specs=[
                pl.BlockSpec((tb, td), lambda i, j: (i, j)),
                pl.BlockSpec((tb, td), lambda i, j: (i, j)),
                pl.BlockSpec((tb, 1), lambda i, j: (i, 0)),
            ],
            out_specs=pl.BlockSpec((1, 1, 1), lambda i, j: (i, 0, 0)),
            scratch_shapes=[pltpu.VMEM((tb, _LANE), jnp.float32)] * n_acc,
        ),
        compiler_params=pltpu.CompilerParams(
            dimension_semantics=("parallel", "arbitrary"),
            vmem_limit_bytes=vmem_limit,
        ),
        cost_estimate=cost,
    )(x1, x2, t2d)

    # Per-tile partial sums -> mean over the true batch size (f32 throughout).
    return jnp.sum(partials) / jnp.float32(b)


def _reference_loss(x1, x2, target, margin, dist_metric):
    x1 = x1.astype(jnp.float32)
    x2 = x2.astype(jnp.float32)
    t = target.astype(jnp.float32)
    if dist_metric == "euclidean":
        dist = jnp.sqrt(jnp.sum((x1 - x2 + 1e-6) ** 2, axis=-1))
    else:
        dot = jnp.sum(x1 * x2, axis=-1)
        n1 = jnp.maximum(jnp.linalg.norm(x1, axis=-1), 1e-8)
        n2 = jnp.maximum(jnp.linalg.norm(x2, axis=-1), 1e-8)
        dist = dot / (n1 * n2)
    loss = 0.5 * (1 - t) * dist ** 2 + 0.5 * t * jnp.maximum(margin - dist, 0.0) ** 2
    return loss.mean()


def _check(name, out, ref, ok, rtol=1e-5, atol=1e-5):
    if not jnp.allclose(out, ref, rtol=rtol, atol=atol):
        print(f"MISMATCH ({name}): kernel={out} ref={ref}")
        return False
    return ok


if __name__ == "__main__":
    key = jax.random.PRNGKey(0)
    k1, k2, k3 = jax.random.split(key, 3)
    margin = 1.0
    ok = True

    # Case 1: small embedding pair, whole-array tiles (B=8, D=32).
    B, D = 8, 32
    x1 = jax.random.normal(k1, (B, D), dtype=jnp.float32)
    x2 = jax.random.normal(k2, (B, D), dtype=jnp.float32)
    tgt = jax.random.bernoulli(k3, 0.5, (B,)).astype(jnp.int32)
    for metric in ("euclidean", "cosine"):
        out = jax.block_until_ready(
            contrastive_loss(x1, x2, tgt, margin=margin, dist_metric=metric))
        ref = _reference_loss(x1, x2, tgt, margin, metric)
        ok = _check(f"case1,{metric}", out, ref, ok)

    # Case 2: explicit small blocks -> ragged edges on both axes, multi-tile
    # feature reduction, row/column masking and accumulator carry.
    B2, D2 = 20, 300
    x1b = jax.random.normal(k1, (B2, D2), dtype=jnp.float32)
    x2b = jax.random.normal(k2, (B2, D2), dtype=jnp.float32)
    tgtb = jax.random.bernoulli(k3, 0.5, (B2,)).astype(jnp.int32)
    for metric in ("euclidean", "cosine"):
        out = jax.block_until_ready(
            contrastive_loss(x1b, x2b, tgtb, margin=margin, dist_metric=metric,
                             block_b=8, block_d=128))
        ref = _reference_loss(x1b, x2b, tgtb, margin, metric)
        ok = _check(f"case2,{metric}", out, ref, ok)

    # Case 3: automatic tiling with B > sublane pack -> nb >= 2 (megacore
    # split) and a single ragged full-D feature step.
    B3, D3 = 24, 300
    x1c = jax.random.normal(k1, (B3, D3), dtype=jnp.float32)
    x2c = jax.random.normal(k2, (B3, D3), dtype=jnp.float32)
    tgtc = jax.random.bernoulli(k3, 0.5, (B3,)).astype(jnp.int32)
    for metric in ("euclidean", "cosine"):
        out = jax.block_until_ready(
            contrastive_loss(x1c, x2c, tgtc, margin=margin, dist_metric=metric))
        ref = _reference_loss(x1c, x2c, tgtc, margin, metric)
        ok = _check(f"case3,{metric}", out, ref, ok)

    # Case 4: bf16 storage dtype (16-row sublane packing, f32 in-kernel math).
    B4, D4 = 20, 256
    x1d = jax.random.normal(k1, (B4, D4), dtype=jnp.float32).astype(jnp.bfloat16)
    x2d = jax.random.normal(k2, (B4, D4), dtype=jnp.float32).astype(jnp.bfloat16)
    tgtd = jax.random.bernoulli(k3, 0.5, (B4,)).astype(jnp.int32)
    for metric in ("euclidean", "cosine"):
        out = jax.block_until_ready(
            contrastive_loss(x1d, x2d, tgtd, margin=margin, dist_metric=metric))
        ref = _reference_loss(x1d, x2d, tgtd, margin, metric)
        ok = _check(f"case4,{metric}", out, ref, ok)

    if ok:
        print("KERNEL_OK")
</pallas_src>

<mosaic_0001>
module attributes {stable_mosaic.version = 11 : i64} {
  func.func @_contrastive_loss_kernel(%arg0: i32, %arg1: i32, %arg2: memref<8x32xf32, #tpu.memory_space<vmem>>, %arg3: memref<8x32xf32, #tpu.memory_space<vmem>>, %arg4: memref<8x1xf32, #tpu.memory_space<vmem>>, %arg5: memref<1x1x1xf32, #tpu.memory_space<vmem>>, %arg6: memref<8x128xf32, #tpu.memory_space<vmem>>) attributes {dimension_semantics = [#tpu.dimension_semantics<parallel>, #tpu.dimension_semantics<arbitrary>], iteration_bounds = array<i64: 1, 1>, scalar_prefetch = 0 : i64, scratch_operands = 1 : i64, tpu.core_type = #tpu.core_type<tc>, window_params = [{transform_indices = @transform_0, window_bounds = array<i64: 8, 32>}, {transform_indices = @transform_1, window_bounds = array<i64: 8, 32>}, {transform_indices = @transform_2, window_bounds = array<i64: 8, 1>}, {transform_indices = @transform_3, window_bounds = array<i64: 1, 1, 1>}]} {
    %c0_i32 = arith.constant 0 : i32
    %0 = arith.cmpi eq, %arg1, %c0_i32 : i32
    %1 = arith.extui %0 : i1 to i32
    %c0_i32_0 = arith.constant 0 : i32
    %2 = arith.cmpi ne, %1, %c0_i32_0 : i32
    scf.if %2 {
      %cst_13 = arith.constant 0.000000e+00 : f32
      %24 = vector.broadcast %cst_13 : f32 to vector<8x128xf32>
      %c0_14 = arith.constant 0 : index
      %c0_15 = arith.constant 0 : index
      %25 = vector.load %arg6[%c0_14, %c0_15] : memref<8x128xf32, #tpu.memory_space<vmem>>, vector<8x128xf32>
      tpu.vector_store %arg6[%c0_14, %c0_15], %24 {strides = array<i32>} : memref<8x128xf32, #tpu.memory_space<vmem>>, vector<8x128xf32>,
    } else {
    }
    %c0 = arith.constant 0 : index
    %c0_1 = arith.constant 0 : index
    %3 = vector.load %arg2[%c0, %c0_1] : memref<8x32xf32, #tpu.memory_space<vmem>>, vector<8x32xf32>
    %c0_2 = arith.constant 0 : index
    %c0_3 = arith.constant 0 : index
    %4 = vector.load %arg3[%c0_2, %c0_3] : memref<8x32xf32, #tpu.memory_space<vmem>>, vector<8x32xf32>
    %5 = arith.subf %3, %4 : vector<8x32xf32>
    %cst = arith.constant 9.99999997E-7 : f32
    %6 = vector.broadcast %cst : f32 to vector<8x32xf32>
    %7 = arith.addf %5, %6 : vector<8x32xf32>
    %8 = arith.mulf %7, %7 : vector<8x32xf32>
    %c0_4 = arith.constant 0 : index
    %c0_5 = arith.constant 0 : index
    %9 = vector.load %arg6[%c0_4, %c0_5] : memref<8x128xf32, #tpu.memory_space<vmem>>, vector<8x128xf32>
    %cst_6 = arith.constant dense<0.000000e+00> : vector<8xf32>
    %10 = vector.multi_reduction <add>, %8, %cst_6 [1] : vector<8x32xf32> to vector<8xf32>
    %11 = vector.shape_cast %10 : vector<8xf32> to vector<8x1xf32>
    %12 = tpu.iota {dimensions = array<i32: 1>} : vector<8x128xi32>
    %c0_i32_7 = arith.constant 0 : i32
    %13 = vector.broadcast %c0_i32_7 : i32 to vector<8x128xi32>
    %14 = arith.cmpi eq, %12, %13 : vector<8x128xi32>
    %cst_8 = arith.constant 0.000000e+00 : f32
    %15 = vector.shape_cast %11 : vector<8x1xf32> to vector<8x1xf32>
    %16 = vector.broadcast %15 : vector<8x1xf32> to vector<8x128xf32>
    %17 = vector.broadcast %cst_8 : f32 to vector<8x128xf32>
    %18 = arith.select %14, %16, %17 : vector<8x128xi1>, vector<8x128xf32>
    %19 = arith.addf %9, %18 : vector<8x128xf32>
    %c0_9 = arith.constant 0 : index
    %c0_10 = arith.constant 0 : index
    %20 = vector.load %arg6[%c0_9, %c0_10] : memref<8x128xf32, #tpu.memory_space<vmem>>, vector<8x128xf32>
    tpu.vector_store %arg6[%c0_9, %c0_10], %19 {strides = array<i32>} : memref<8x128xf32, #tpu.memory_space<vmem>>, vector<8x128xf32>,
    %c0_i32_11 = arith.constant 0 : i32
    %21 = arith.cmpi eq, %arg1, %c0_i32_11 : i32
    %22 = arith.extui %21 : i1 to i32
    %c0_i32_12 = arith.constant 0 : i32
    %23 = arith.cmpi ne, %22, %c0_i32_12 : i32
    scf.if %23 {
      %c0_13 = arith.constant 0 : index
      %c0_14 = arith.constant 0 : index
      %24 = vector.load %arg4[%c0_13, %c0_14] : memref<8x1xf32, #tpu.memory_space<vmem>>, vector<8x1xf32>
      %c0_15 = arith.constant 0 : index
      %c0_16 = arith.constant 0 : index
      %25 = vector.load %arg6[%c0_15, %c0_16] : memref<8x128xf32, #tpu.memory_space<vmem>>, vector<8x128xf32>
      %cst_17 = arith.constant dense<0.000000e+00> : vector<8xf32>
      %26 = vector.multi_reduction <add>, %25, %cst_17 [1] : vector<8x128xf32> to vector<8xf32>
      %27 = vector.shape_cast %26 : vector<8xf32> to vector<8x1xf32>
      %28 = math.sqrt %27 : vector<8x1xf32>
      %cst_18 = arith.constant 1.000000e+00 : f32
      %29 = vector.broadcast %cst_18 : f32 to vector<8x1xf32>
      %30 = arith.subf %29, %24 : vector<8x1xf32>
      %cst_19 = arith.constant 5.000000e-01 : f32
      %31 = vector.broadcast %cst_19 : f32 to vector<8x1xf32>
      %32 = arith.mulf %31, %30 : vector<8x1xf32>
      %33 = arith.mulf %32, %27 : vector<8x1xf32>
      %cst_20 = arith.constant 1.000000e+00 : f32
      %34 = vector.broadcast %cst_20 : f32 to vector<8x1xf32>
      %35 = arith.subf %34, %28 : vector<8x1xf32>
      %cst_21 = arith.constant 0.000000e+00 : f32
      %36 = vector.broadcast %cst_21 : f32 to vector<8x1xf32>
      %37 = arith.maximumf %35, %36 : vector<8x1xf32>
      %cst_22 = arith.constant 5.000000e-01 : f32
      %38 = vector.broadcast %cst_22 : f32 to vector<8x1xf32>
      %39 = arith.mulf %38, %24 : vector<8x1xf32>
      %40 = arith.mulf %39, %37 : vector<8x1xf32>
      %41 = arith.mulf %40, %37 : vector<8x1xf32>
      %42 = arith.addf %33, %41 : vector<8x1xf32>
      %43 = vector.shape_cast %42 : vector<8x1xf32> to vector<1x8x1xf32>
      %cst_23 = arith.constant dense<0.000000e+00> : vector<1xf32>
      %44 = vector.multi_reduction <add>, %43, %cst_23 [1, 2] : vector<1x8x1xf32> to vector<1xf32>
      %45 = vector.shape_cast %44 : vector<1xf32> to vector<1x1x1xf32>
      %46 = vector.extract %45[0, 0, 0] : f32 from vector<1x1x1xf32>
      %47 = vector.broadcast %46 : f32 to vector<1x1x1xf32>
      %c0_24 = arith.constant 0 : index
      %c0_25 = arith.constant 0 : index
      %c0_26 = arith.constant 0 : index
      %48 = vector.load %arg5[%c0_24, %c0_25, %c0_26] : memref<1x1x1xf32, #tpu.memory_space<vmem>>, vector<1x1x1xf32>
      tpu.vector_store %arg5[%c0_24, %c0_25, %c0_26], %47 {strides = array<i32>} : memref<1x1x1xf32, #tpu.memory_space<vmem>>, vector<1x1x1xf32>,
    } else {
    }
    return
  }
  func.func @transform_0(%arg0: i32, %arg1: i32) -> (i32, i32) {
    %c0_i32 = arith.constant 0 : i32
    return %arg0, %arg1 : i32, i32
  }
  func.func @transform_1(%arg0: i32, %arg1: i32) -> (i32, i32) {
    %c0_i32 = arith.constant 0 : i32
    return %arg0, %arg1 : i32, i32
  }
  func.func @transform_2(%arg0: i32, %arg1: i32) -> (i32, i32) {
    %c0_i32 = arith.constant 0 : i32
    %c0_i32_0 = arith.constant 0 : i32
    return %arg0, %c0_i32 : i32, i32
  }
  func.func @transform_3(%arg0: i32, %arg1: i32) -> (i32, i32, i32) {
    %c0_i32 = arith.constant 0 : i32
    %c0_i32_0 = arith.constant 0 : i32
    %c0_i32_1 = arith.constant 0 : i32
    return %arg0, %c0_i32, %c0_i32_0 : i32, i32, i32
  }
}

</mosaic_0001>

<llo_original>
// kernel: tpu_custom_call.1
$region0: #{tpu_custom_call.1}
  #allocation0 [shape = 'u32[]', space=smem, size = 0x4, offset = 0x4, fixed_abs, tag = 'smem constant byte address 0x4 - core index']
  #allocation1 [shape = 'u32[144,128]{1,0:T(1,128)}', space=vmem, size = 0x12000, scoped, tag = 'internal scratch']
  #allocation2 [shape = 'f32[8,128]{1,0:T(8,128)}', space=vmem, size = 0x1000, scoped, tag = 'scratch operand']
  %s0 = inlined_call_operand.vmem [shape: f32[8,32], index: 0, kind: input, shape index: {}]
  %s1 = inlined_call_operand.hbm [shape: f32[8,32], index: 1, kind: input, shape index: {}]
  %s2 = inlined_call_operand.vmem [shape: f32[8,1], index: 2, kind: input, shape index: {}]
  %s3 = inlined_call_operand.hbm [shape: f32[1,1,1], index: 3, kind: output, shape index: {}]
  %s4 = sld [smem:[#allocation0]]
  $region34: #{tpu_custom_call.1} parent=0
    _
  %s6 = ssub.s32 1, %s4
  %s7 = scalar_select 0, %s6, %s4
  $region1: #{tpu_custom_call.1} parent=0
    #allocation3 [shape = 'u8[4096]{0}', space=vmem, size = 0x1000, scoped, tag = 'input window, operand 1, single buffered']
    #allocation4 [shape = 's32[1]{0}', space=sflag, size = 0x4, scoped, tag = 'scoped memory for tpu_custom_call.1']
    #allocation5 [shape = 's32[1]{0}', space=sflag, size = 0x4, scoped, tag = 'scoped memory for tpu_custom_call.1']
    #allocation6 [shape = 'u8[512]{0}', space=vmem, size = 0x400, scoped, tag = 'output window, operand 0, single buffered']
    %8 = vsyncpa [#allocation4], 0
    %9 = vsyncpa [#allocation5], 0
    // Predicated region
    $region2: #{tpu_custom_call.1} parent=1 // pred_check
      _
    $region3: #{tpu_custom_call.1} parent=1 // pred_check_branch
      %11 = sbr.rel (0) target = $region5
    $region4: #{tpu_custom_call.1} parent=1 // pred_region
      _
    $region5: #{tpu_custom_call.1} parent=1 // pred_fallthru
      _
    // Predicated region
    $region6: #{tpu_custom_call.1} parent=1 // pred_check
      _
    $region7: #{tpu_custom_call.1} parent=1 // pred_check_branch
      %13 = sbr.rel (0) target = $region9
    $region8: #{tpu_custom_call.1} parent=1 // pred_region
      %s15 = ssub.s32 128, 128
      %16 = vsyncadd [#allocation4], %s15
      %s18 = sshll.u32 [#allocation3], 4
      %s19 = int_to_ptr.vmem [resolvable:$true] %s18
      %21 = dma.hbm_to_vmem [thread:$0]  %s1, 128, %s19, [#allocation4]
    $region9: #{tpu_custom_call.1} parent=1 // pred_fallthru
      _
    // Predicated region
    $region10: #{tpu_custom_call.1} parent=1 // pred_check
      _
    $region11: #{tpu_custom_call.1} parent=1 // pred_check_branch
      %23 = sbr.rel (0) target = $region13
    $region12: #{tpu_custom_call.1} parent=1 // pred_region
      _
    $region13: #{tpu_custom_call.1} parent=1 // pred_fallthru
      _
    // Predicated region
    $region14: #{tpu_custom_call.1} parent=1 // pred_check
      _
    $region15: #{tpu_custom_call.1} parent=1 // pred_check_branch
      %25 = sbr.rel (0) target = $region17
    $region16: #{tpu_custom_call.1} parent=1 // pred_region
      %26 = dma.done [#allocation4], 128
    $region17: #{tpu_custom_call.1} parent=1 // pred_fallthru
      _
    %p27 = scmp.eq.s32.totalorder 0, 0
    // Predicated region
    $region18: #{tpu_custom_call.1} parent=1 // pred_check
      %p28 = pneg %p27
    $region19: #{tpu_custom_call.1} parent=1 // pred_check_branch
      %30 = sbr.rel (%p28) target = $region21
    $region20: #{tpu_custom_call.1} parent=1 // pred_region
      %31 = vst [vmem:[#allocation2] sm:$0xff] 0.0
    $region21: #{tpu_custom_call.1} parent=1 // pred_fallthru
      _
    %v32 = vld [vmem:[%s0] sm:$0xff]
    %v33 = vld [vmem:[#allocation3] sm:$0xff]
    %v34 = vsub.f32 %v32, %v33
    %v35 = vadd.f32 %v34, 1e-06
    %v36 = vmul.f32 %v35, %v35
    %v37 = vld [vmem:[#allocation2] sm:$0xff]
    %vm38 = vcmask 261120
    %v39 = vsel %vm38, %v36, 0.0
    %40 = vadd.xlane.f32.xlu0 %v39
    %v41 = vpop.xlane.xlu0 %40
    %v42 = vlaneseq
    %v43 = vand.u32 %v42, 127
    %vm44 = vcmp.eq.s32.totalorder %v43, 0
    %v45 = vsel %vm44, %v41, 0.0
    %v46 = vadd.f32 %v37, %v45
    %47 = vst [vmem:[#allocation2] sm:$0xff] %v46
    // Predicated region
    $region22: #{tpu_custom_call.1} parent=1 // pred_check
      %p48 = pneg %p27
    $region23: #{tpu_custom_call.1} parent=1 // pred_check_branch
      %50 = sbr.rel (%p48) target = $region25
    $region24: #{tpu_custom_call.1} parent=1 // pred_region
      %v51 = vld [vmem:[%s2] sm:$0xff]
      %v52 = vld [vmem:[#allocation2] sm:$0xff]
      %53 = vadd.xlane.f32.xlu0 %v52
      %v54 = vpop.xlane.xlu0 %53
      %v55 = vrsqrt.pop %v54
      %v56 = vmul.f32 %v54, %v55
      %vm57 = vcmp.eq.f32.partialorder %v54, inf
      %v58 = vsel %vm57, %v54, %v56
      %vm59 = vcmp.eq.f32.partialorder %v54, 0.0
      %v60 = vand.u32 %v54, 2147483648
      %v61 = vsel %vm59, %v60, %v58
      %v62 = vsub.f32 1.0, %v51
      %v63 = vmul.f32 %v62, 0.5
      %v64 = vmul.f32 %v63, %v54
      %v65 = vsub.f32 1.0, %v61
      %v66 = vmax.f32 %v65, 0.0
      %v67 = vmul.f32 %v51, 0.5
      %v68 = vmul.f32 %v67, %v66
      %v69 = vmul.f32 %v68, %v66
      %v70 = vadd.f32 %v64, %v69
      %vm71 = vcmask 7168
      %v72 = vsel %vm71, %v70, 0.0
      %73 = vadd.xlane.f32.xlu0 %v72
      %v74 = vpop.xlane.xlu0 %73
      %v75 = vrot.slane %v74, 4
      %v76 = vadd.f32 %v74, %v75
      %v77 = vrot.slane %v76, 2
      %v78 = vadd.f32 %v76, %v77
      %v79 = vrot.slane %v78, 1
      %v80 = vadd.f32 %v78, %v79
      %s81 = vtos %v80
      %v82 = vstv %s81
      %vm83 = vcmask 0
      %84 = vst.msk [vmem:[#allocation6] sm:$0x1] %vm83, %v82
    $region25: #{tpu_custom_call.1} parent=1 // pred_fallthru
      _
    // Predicated region
    $region26: #{tpu_custom_call.1} parent=1 // pred_check
      _
    $region27: #{tpu_custom_call.1} parent=1 // pred_check_branch
      %86 = sbr.rel (0) target = $region29
    $region28: #{tpu_custom_call.1} parent=1 // pred_region
      %s88 = ssub.s32 16, 16
      %89 = vsyncadd [#allocation5], %s88
      %s91 = sshll.u32 [#allocation6], 4
      %s92 = int_to_ptr.vmem [resolvable:$true] %s91
      %94 = dma.vmem_to_hbm [thread:$0]  %s92, 16, %s3, [#allocation5]
    $region29: #{tpu_custom_call.1} parent=1 // pred_fallthru
      _
    // Predicated region
    $region30: #{tpu_custom_call.1} parent=1 // pred_check
      _
    $region31: #{tpu_custom_call.1} parent=1 // pred_check_branch
      %96 = sbr.rel (0) target = $region33
    $region32: #{tpu_custom_call.1} parent=1 // pred_region
      %97 = dma.done [#allocation5], 16
    $region33: #{tpu_custom_call.1} parent=1 // pred_fallthru
      _
    %98 = vsyncpa [#allocation4], 1
    %99 = vsyncpa [#allocation5], 1

</llo_original>
